<compile_context>
chip_gen: v7x
topology: tpu7x:2x2x1
jax: 0.10.0
libtpu: 0.0.40
codegen_flags: <defaults>
</compile_context>

<pallas_src>
import math

import jax
import jax.numpy as jnp
from jax.experimental import pallas as pl
from jax.experimental.pallas import tpu as pltpu

LANE = 128       # vreg lane width
SUBLANE = 8      # f32 sublanes
MIN_TILE = 256   # don't go below this batch tile unless the whole batch is smaller
TARGET_STEPS = 4 # aim for >=2 grid steps per TensorCore on v7x when batch permits


def _round_up(n: int, m: int) -> int:
    return ((n + m - 1) // m) * m


def dqn_mlp_kernel(x_ref, w1_ref, b1_ref, w2_ref, b2_ref, w3_ref, b3_ref, o_ref):
    """Fused 3-layer MLP forward on one batch tile: relu(relu(x@W1+b1)@W2+b2)@W3+b3.

    Matmuls hit the MXU (f32 accumulation), bias-add / ReLU run on the VPU in f32,
    all in a single kernel body. Weights/biases are resident VMEM blocks (same block
    index every grid step); only the x / out batch tiles stream per step.
    """
    x = x_ref[...]
    h1 = jnp.dot(x, w1_ref[...], preferred_element_type=jnp.float32) + b1_ref[...]
    h1 = jnp.maximum(h1, 0.0)          # ReLU (Dropout -> identity in eval mode)
    h2 = jnp.dot(h1, w2_ref[...], preferred_element_type=jnp.float32) + b2_ref[...]
    h2 = jnp.maximum(h2, 0.0)          # ReLU (Dropout -> identity in eval mode)
    o_ref[...] = (
        jnp.dot(h2, w3_ref[...], preferred_element_type=jnp.float32) + b3_ref[...]
    ).astype(o_ref.dtype)


def prepare_params(params):
    """One-time padding of weights/biases (hoisted out of the per-call path).

    Only the hidden dim is padded to a 128-lane multiple (keeps the intermediate
    activations and the W2 contraction lane-dense); the state and action dims are
    kept at their true sizes. Zero padding is math-neutral (zero weight rows/cols).
    """
    w1, b1, w2, b2, w3, b3 = params
    state_size, hidden = w1.shape
    action_size = w3.shape[1]
    h_pad = _round_up(hidden, LANE)
    f32 = jnp.float32
    w1p = jnp.zeros((state_size, h_pad), f32).at[:, :hidden].set(w1)
    b1p = jnp.zeros((1, h_pad), f32).at[:, :hidden].set(b1)
    w2p = jnp.zeros((h_pad, h_pad), f32).at[:hidden, :hidden].set(w2)
    b2p = jnp.zeros((1, h_pad), f32).at[:, :hidden].set(b2)
    w3p = jnp.zeros((h_pad, action_size), f32).at[:hidden, :].set(w3)
    b3p = b3.astype(f32).reshape(1, action_size)
    return (w1p, b1p, w2p, b2p, w3p, b3p)


def _pick_tb(batch: int, block_batch: int) -> int:
    """Batch tile: single step for small batches, ~TARGET_STEPS steps (tile >= MIN_TILE,
    <= block_batch) for large ones. block_batch default keeps v5e's 16 MiB scoped VMEM safe."""
    b_up = _round_up(batch, SUBLANE)
    if b_up <= MIN_TILE:
        return b_up                                   # one grid step; stepping overhead dominates below this
    tb = _round_up(pl.cdiv(b_up, TARGET_STEPS), SUBLANE)
    tb = max(MIN_TILE, min(tb, block_batch))
    return _round_up(tb, SUBLANE)


def dqn_forward(x, prepared_params, *, block_batch=1024):
    """Batch-tiled fused forward pass in one pallas_call.

    Weights/biases must already be padded via prepare_params(). x is passed through
    untouched whenever batch is a multiple of the chosen tile (no wrapper copies).
    """
    w1p, b1p, w2p, b2p, w3p, b3p = prepared_params
    batch, state_size = x.shape
    assert state_size == w1p.shape[0], "x feature dim must match W1"
    h_pad = w1p.shape[1]
    action_size = w3p.shape[1]

    tb = _pick_tb(batch, block_batch)
    b_pad = _round_up(batch, tb)
    grid = (b_pad // tb,)

    if b_pad != batch:
        xp = jnp.zeros((b_pad, state_size), x.dtype).at[:batch].set(x)
    else:
        xp = x   # zero-copy path

    def batch_map(i):          # x / out tiles stream over the batch axis
        return (i, 0)

    def resident(i):           # weights/biases: same block every step -> stay in VMEM
        return (0, 0)

    out = pl.pallas_call(
        dqn_mlp_kernel,
        out_shape=jax.ShapeDtypeStruct((b_pad, action_size), jnp.float32),
        grid=grid,
        in_specs=[
            pl.BlockSpec((tb, state_size), batch_map),     # x tile (unpadded feature dim)
            pl.BlockSpec((state_size, h_pad), resident),   # W1
            pl.BlockSpec((1, h_pad), resident),            # b1
            pl.BlockSpec((h_pad, h_pad), resident),        # W2
            pl.BlockSpec((1, h_pad), resident),            # b2
            pl.BlockSpec((h_pad, action_size), resident),  # W3 (unpadded action dim)
            pl.BlockSpec((1, action_size), resident),      # b3
        ],
        out_specs=pl.BlockSpec((tb, action_size), batch_map),
        compiler_params=pltpu.CompilerParams(
            # batch tiles are independent -> shard across both TensorCores on v7x
            dimension_semantics=("parallel",),
        ),
    )(xp, w1p, b1p, w2p, b2p, w3p, b3p)

    return out if b_pad == batch else out[:batch]


def xavier_uniform(key, fan_in, fan_out):
    """torch.nn.init.xavier_uniform_ equivalent (symmetric in fan_in/fan_out)."""
    bound = math.sqrt(6.0 / (fan_in + fan_out))
    # stored as (in, out) so the kernel does x @ W
    return jax.random.uniform(
        key, (fan_in, fan_out), dtype=jnp.float32, minval=-bound, maxval=bound
    )


def init_dqn_params(key, state_size, action_size, hidden_size=128, num_layers=2):
    """Deterministic parameter init matching DQNNetwork.__init__ / _init_weights.

    num_layers=2 -> Linear(S,H), Linear(H,H), Linear(H,A); biases filled with 0.01.
    """
    assert num_layers == 2, "kernel is specialized to the default num_layers=2"
    k1, k2, k3 = jax.random.split(key, 3)
    w1 = xavier_uniform(k1, state_size, hidden_size)
    b1 = jnp.full((1, hidden_size), 0.01, dtype=jnp.float32)
    w2 = xavier_uniform(k2, hidden_size, hidden_size)
    b2 = jnp.full((1, hidden_size), 0.01, dtype=jnp.float32)
    w3 = xavier_uniform(k3, hidden_size, action_size)
    b3 = jnp.full((1, action_size), 0.01, dtype=jnp.float32)
    return (w1, b1, w2, b2, w3, b3)


if __name__ == "__main__":
    # DQN-like shapes: state_size=16, hidden=128 (module default), actions=4.
    batch, state_size, hidden_size, action_size = 16, 16, 128, 4

    key = jax.random.PRNGKey(0)
    k_params, k_x, k_x2 = jax.random.split(key, 3)

    raw_params = init_dqn_params(k_params, state_size, action_size, hidden_size)
    prepared = prepare_params(raw_params)   # once, at init (not per forward call)

    def ref_forward(xin):
        w1, b1, w2, b2, w3, b3 = raw_params
        h = jnp.maximum(xin @ w1 + b1, 0.0)
        h = jnp.maximum(h @ w2 + b2, 0.0)
        return h @ w3 + b3

    # Case 1: small batch -> single grid step, x passed through with zero wrapper copies.
    x = jax.random.normal(k_x, (batch, state_size), dtype=jnp.float32)
    out = jax.block_until_ready(dqn_forward(x, prepared))
    assert out.shape == (batch, action_size)
    assert jnp.allclose(out, ref_forward(x), atol=1e-4, rtol=1e-4), "mismatch (case 1)"

    # Case 2: replay-buffer-sized batch -> multi-step batch grid (4 steps; both v7x TCs
    # get work) plus the row-padding path. Slightly looser tol: more output elements.
    x2 = jax.random.normal(k_x2, (1000, state_size), dtype=jnp.float32)
    out2 = jax.block_until_ready(dqn_forward(x2, prepared))
    assert out2.shape == (1000, action_size)
    assert jnp.allclose(out2, ref_forward(x2), atol=5e-4, rtol=5e-4), "mismatch (case 2)"

    print("KERNEL_OK")
</pallas_src>

<mosaic_0001>
module attributes {stable_mosaic.version = 11 : i64} {
  func.func @dqn_mlp_kernel(%arg0: i32, %arg1: memref<16x16xf32, #tpu.memory_space<vmem>>, %arg2: memref<16x128xf32, #tpu.memory_space<vmem>>, %arg3: memref<1x128xf32, #tpu.memory_space<vmem>>, %arg4: memref<128x128xf32, #tpu.memory_space<vmem>>, %arg5: memref<1x128xf32, #tpu.memory_space<vmem>>, %arg6: memref<128x4xf32, #tpu.memory_space<vmem>>, %arg7: memref<1x4xf32, #tpu.memory_space<vmem>>, %arg8: memref<16x4xf32, #tpu.memory_space<vmem>>) attributes {dimension_semantics = [#tpu.dimension_semantics<parallel>], iteration_bounds = array<i64: 1>, scalar_prefetch = 0 : i64, scratch_operands = 0 : i64, tpu.core_type = #tpu.core_type<tc>, window_params = [{transform_indices = @transform_0, window_bounds = array<i64: 16, 16>}, {pipeline_mode = #tpu.pipeline_mode<synchronous>, transform_indices = @transform_1, window_bounds = array<i64: 16, 128>}, {pipeline_mode = #tpu.pipeline_mode<synchronous>, transform_indices = @transform_2, window_bounds = array<i64: 1, 128>}, {pipeline_mode = #tpu.pipeline_mode<synchronous>, transform_indices = @transform_3, window_bounds = array<i64: 128, 128>}, {pipeline_mode = #tpu.pipeline_mode<synchronous>, transform_indices = @transform_4, window_bounds = array<i64: 1, 128>}, {pipeline_mode = #tpu.pipeline_mode<synchronous>, transform_indices = @transform_5, window_bounds = array<i64: 128, 4>}, {pipeline_mode = #tpu.pipeline_mode<synchronous>, transform_indices = @transform_6, window_bounds = array<i64: 1, 4>}, {transform_indices = @transform_7, window_bounds = array<i64: 16, 4>}]} {
    %c0 = arith.constant 0 : index
    %c0_0 = arith.constant 0 : index
    %0 = vector.load %arg1[%c0, %c0_0] : memref<16x16xf32, #tpu.memory_space<vmem>>, vector<16x16xf32>
    %c0_1 = arith.constant 0 : index
    %c0_2 = arith.constant 0 : index
    %1 = vector.load %arg2[%c0_1, %c0_2] : memref<16x128xf32, #tpu.memory_space<vmem>>, vector<16x128xf32>
    %cst = arith.constant dense<0.000000e+00> : vector<16x128xf32>
    %2 = tpu.matmul %0, %1, %cst {dimension_numbers = #tpu.dot_dimension_numbers<[1], [0], [0], [1], [0, 0, 1, 1], [], []>} : vector<16x16xf32>, vector<16x128xf32>, vector<16x128xf32> -> vector<16x128xf32>
    %c0_3 = arith.constant 0 : index
    %c0_4 = arith.constant 0 : index
    %3 = vector.load %arg3[%c0_3, %c0_4] : memref<1x128xf32, #tpu.memory_space<vmem>>, vector<1x128xf32>
    %4 = vector.broadcast %3 : vector<1x128xf32> to vector<16x128xf32>
    %5 = arith.addf %2, %4 : vector<16x128xf32>
    %cst_5 = arith.constant 0.000000e+00 : f32
    %6 = vector.broadcast %cst_5 : f32 to vector<16x128xf32>
    %7 = arith.maximumf %5, %6 : vector<16x128xf32>
    %c0_6 = arith.constant 0 : index
    %c0_7 = arith.constant 0 : index
    %8 = vector.load %arg4[%c0_6, %c0_7] : memref<128x128xf32, #tpu.memory_space<vmem>>, vector<128x128xf32>
    %cst_8 = arith.constant dense<0.000000e+00> : vector<16x128xf32>
    %9 = tpu.matmul %7, %8, %cst_8 {dimension_numbers = #tpu.dot_dimension_numbers<[1], [0], [0], [1], [0, 0, 1, 1], [], []>} : vector<16x128xf32>, vector<128x128xf32>, vector<16x128xf32> -> vector<16x128xf32>
    %c0_9 = arith.constant 0 : index
    %c0_10 = arith.constant 0 : index
    %10 = vector.load %arg5[%c0_9, %c0_10] : memref<1x128xf32, #tpu.memory_space<vmem>>, vector<1x128xf32>
    %11 = vector.broadcast %10 : vector<1x128xf32> to vector<16x128xf32>
    %12 = arith.addf %9, %11 : vector<16x128xf32>
    %cst_11 = arith.constant 0.000000e+00 : f32
    %13 = vector.broadcast %cst_11 : f32 to vector<16x128xf32>
    %14 = arith.maximumf %12, %13 : vector<16x128xf32>
    %c0_12 = arith.constant 0 : index
    %c0_13 = arith.constant 0 : index
    %15 = vector.load %arg6[%c0_12, %c0_13] : memref<128x4xf32, #tpu.memory_space<vmem>>, vector<128x4xf32>
    %cst_14 = arith.constant dense<0.000000e+00> : vector<16x4xf32>
    %16 = tpu.matmul %14, %15, %cst_14 {dimension_numbers = #tpu.dot_dimension_numbers<[1], [0], [0], [1], [0, 0, 1, 1], [], []>} : vector<16x128xf32>, vector<128x4xf32>, vector<16x4xf32> -> vector<16x4xf32>
    %c0_15 = arith.constant 0 : index
    %c0_16 = arith.constant 0 : index
    %17 = vector.load %arg7[%c0_15, %c0_16] : memref<1x4xf32, #tpu.memory_space<vmem>>, vector<1x4xf32>
    %18 = vector.broadcast %17 : vector<1x4xf32> to vector<16x4xf32>
    %19 = arith.addf %16, %18 : vector<16x4xf32>
    %c0_17 = arith.constant 0 : index
    %c0_18 = arith.constant 0 : index
    %20 = vector.load %arg8[%c0_17, %c0_18] : memref<16x4xf32, #tpu.memory_space<vmem>>, vector<16x4xf32>
    tpu.vector_store %arg8[%c0_17, %c0_18], %19 {strides = array<i32>} : memref<16x4xf32, #tpu.memory_space<vmem>>, vector<16x4xf32>,
    return
  }
  func.func @transform_0(%arg0: i32) -> (i32, i32) {
    %c0_i32 = arith.constant 0 : i32
    %c0_i32_0 = arith.constant 0 : i32
    return %arg0, %c0_i32 : i32, i32
  }
  func.func @transform_1(%arg0: i32) -> (i32, i32) {
    %c0_i32 = arith.constant 0 : i32
    %c0_i32_0 = arith.constant 0 : i32
    %c0_i32_1 = arith.constant 0 : i32
    return %c0_i32, %c0_i32_0 : i32, i32
  }
  func.func @transform_2(%arg0: i32) -> (i32, i32) {
    %c0_i32 = arith.constant 0 : i32
    %c0_i32_0 = arith.constant 0 : i32
    %c0_i32_1 = arith.constant 0 : i32
    return %c0_i32, %c0_i32_0 : i32, i32
  }
  func.func @transform_3(%arg0: i32) -> (i32, i32) {
    %c0_i32 = arith.constant 0 : i32
    %c0_i32_0 = arith.constant 0 : i32
    %c0_i32_1 = arith.constant 0 : i32
    return %c0_i32, %c0_i32_0 : i32, i32
  }
  func.func @transform_4(%arg0: i32) -> (i32, i32) {
    %c0_i32 = arith.constant 0 : i32
    %c0_i32_0 = arith.constant 0 : i32
    %c0_i32_1 = arith.constant 0 : i32
    return %c0_i32, %c0_i32_0 : i32, i32
  }
  func.func @transform_5(%arg0: i32) -> (i32, i32) {
    %c0_i32 = arith.constant 0 : i32
    %c0_i32_0 = arith.constant 0 : i32
    %c0_i32_1 = arith.constant 0 : i32
    return %c0_i32, %c0_i32_0 : i32, i32
  }
  func.func @transform_6(%arg0: i32) -> (i32, i32) {
    %c0_i32 = arith.constant 0 : i32
    %c0_i32_0 = arith.constant 0 : i32
    %c0_i32_1 = arith.constant 0 : i32
    return %c0_i32, %c0_i32_0 : i32, i32
  }
  func.func @transform_7(%arg0: i32) -> (i32, i32) {
    %c0_i32 = arith.constant 0 : i32
    %c0_i32_0 = arith.constant 0 : i32
    return %arg0, %c0_i32 : i32, i32
  }
}

</mosaic_0001>

<llo_original>
// kernel: tpu_custom_call.1
$region0: #{tpu_custom_call.1}
  #allocation0 [shape = 'u32[]', space=smem, size = 0x4, offset = 0x4, fixed_abs, tag = 'smem constant byte address 0x4 - core index']
  #allocation1 [shape = 'u32[144,128]{1,0:T(1,128)}', space=vmem, size = 0x12000, scoped, tag = 'internal scratch']
  %s0 = inlined_call_operand.hbm [shape: f32[16,16], index: 0, kind: input, shape index: {}]
  %s1 = inlined_call_operand.hbm [shape: f32[16,128], index: 1, kind: input, shape index: {}]
  %s2 = inlined_call_operand.vmem [shape: f32[1,128], index: 2, kind: input, shape index: {}]
  %s3 = inlined_call_operand.vmem [shape: f32[128,128], index: 3, kind: input, shape index: {}]
  %s4 = inlined_call_operand.vmem [shape: f32[1,128], index: 4, kind: input, shape index: {}]
  %s5 = inlined_call_operand.vmem [shape: f32[128,4], index: 5, kind: input, shape index: {}]
  %s6 = inlined_call_operand.vmem [shape: f32[1,4], index: 6, kind: input, shape index: {}]
  %s7 = inlined_call_operand.vmem [shape: f32[16,4], index: 7, kind: output, shape index: {}]
  %s8 = sld [smem:[#allocation0]]
  $region46: #{tpu_custom_call.1} parent=0
    _
  %s10 = ssub.s32 1, %s8
  %s11 = scalar_select 0, %s10, %s8
  $region1: #{tpu_custom_call.1} parent=0
    #allocation2 [shape = 'u8[8192]{0}', space=vmem, size = 0x2000, scoped, tag = 'input window, operand 0, single buffered']
    #allocation3 [shape = 's32[1]{0}', space=sflag, size = 0x4, scoped, tag = 'scoped memory for tpu_custom_call.1']
    #allocation4 [shape = 'u8[8192]{0}', space=vmem, size = 0x2000, scoped, tag = 'input window, operand 1, single buffered']
    #allocation5 [shape = 's32[1]{0}', space=sflag, size = 0x4, scoped, tag = 'scoped memory for tpu_custom_call.1']
    %12 = vsyncpa [#allocation3], 0
    %13 = vsyncpa [#allocation5], 0
    // Predicated region
    $region2: #{tpu_custom_call.1} parent=1 // pred_check
      _
    $region3: #{tpu_custom_call.1} parent=1 // pred_check_branch
      %15 = sbr.rel (0) target = $region5
    $region4: #{tpu_custom_call.1} parent=1 // pred_region
      %s17 = ssub.s32 256, 256
      %18 = vsyncadd [#allocation3], %s17
      %s19 = sshll.u32 [#allocation2], 4
      %s20 = int_to_ptr.vmem [resolvable:$true] %s19
      %25 = dma.hbm_to_vmem [thread:$0]  %s0, 256, %s20, [#allocation3], 128, 128, 8
    $region5: #{tpu_custom_call.1} parent=1 // pred_fallthru
      _
    // Predicated region
    $region6: #{tpu_custom_call.1} parent=1 // pred_check
      _
    $region7: #{tpu_custom_call.1} parent=1 // pred_check_branch
      %27 = sbr.rel (0) target = $region9
    $region8: #{tpu_custom_call.1} parent=1 // pred_region
      %s29 = ssub.s32 256, 256
      %30 = vsyncadd [#allocation5], %s29
      %s31 = sshll.u32 [#allocation4], 4
      %s32 = int_to_ptr.vmem [resolvable:$true] %s31
      %37 = dma.hbm_to_vmem [thread:$0]  %s1, 256, %s32, [#allocation5], 128, 128, 8
    $region9: #{tpu_custom_call.1} parent=1 // pred_fallthru
      _
    // Predicated region
    $region10: #{tpu_custom_call.1} parent=1 // pred_check
      _
    $region11: #{tpu_custom_call.1} parent=1 // pred_check_branch
      %39 = sbr.rel (0) target = $region13
    $region12: #{tpu_custom_call.1} parent=1 // pred_region
      _
    $region13: #{tpu_custom_call.1} parent=1 // pred_fallthru
      _
    // Predicated region
    $region14: #{tpu_custom_call.1} parent=1 // pred_check
      _
    $region15: #{tpu_custom_call.1} parent=1 // pred_check_branch
      %41 = sbr.rel (0) target = $region17
    $region16: #{tpu_custom_call.1} parent=1 // pred_region
      _
    $region17: #{tpu_custom_call.1} parent=1 // pred_fallthru
      _
    // Predicated region
    $region18: #{tpu_custom_call.1} parent=1 // pred_check
      _
    $region19: #{tpu_custom_call.1} parent=1 // pred_check_branch
      %43 = sbr.rel (0) target = $region21
    $region20: #{tpu_custom_call.1} parent=1 // pred_region
      _
    $region21: #{tpu_custom_call.1} parent=1 // pred_fallthru
      _
    // Predicated region
    $region22: #{tpu_custom_call.1} parent=1 // pred_check
      _
    $region23: #{tpu_custom_call.1} parent=1 // pred_check_branch
      %45 = sbr.rel (0) target = $region25
    $region24: #{tpu_custom_call.1} parent=1 // pred_region
      _
    $region25: #{tpu_custom_call.1} parent=1 // pred_fallthru
      _
    // Predicated region
    $region26: #{tpu_custom_call.1} parent=1 // pred_check
      _
    $region27: #{tpu_custom_call.1} parent=1 // pred_check_branch
      %47 = sbr.rel (0) target = $region29
    $region28: #{tpu_custom_call.1} parent=1 // pred_region
      _
    $region29: #{tpu_custom_call.1} parent=1 // pred_fallthru
      _
    // Predicated region
    $region30: #{tpu_custom_call.1} parent=1 // pred_check
      _
    $region31: #{tpu_custom_call.1} parent=1 // pred_check_branch
      %49 = sbr.rel (0) target = $region33
    $region32: #{tpu_custom_call.1} parent=1 // pred_region
      %50 = dma.done [#allocation3], 256
    $region33: #{tpu_custom_call.1} parent=1 // pred_fallthru
      _
    // Predicated region
    $region34: #{tpu_custom_call.1} parent=1 // pred_check
      _
    $region35: #{tpu_custom_call.1} parent=1 // pred_check_branch
      %52 = sbr.rel (0) target = $region37
    $region36: #{tpu_custom_call.1} parent=1 // pred_region
      %53 = dma.done [#allocation5], 256
    $region37: #{tpu_custom_call.1} parent=1 // pred_fallthru
      _
    %v54 = vld [vmem:[#allocation2] sm:$0xff]
    %v55 = vld [vmem:[#allocation2 + $0x8] sm:$0xff]
    %v56 = vld [vmem:[#allocation4] sm:$0xff]
    %v57 = vld [vmem:[#allocation4 + $0x8] sm:$0xff]
    %v58 = vld [vmem:[%s2] sm:$0x1]
    %v60 = vlaneseq
    %v61 = vshrl.u32 %v60, 7
    %v62 = vsub.s32 0, %v61
    %v63 = vrot.slane %v58, %v62
    %vm65 = vcmask 130048
    %v67 = vsel %vm65, %v54, 0
    %v70 = vsel %vm65, %v55, 0
    %72 = vmatprep.subr.mxu0 0.0
    %73 = vmatpush1.msra.mxu0 %v56
    %74 = vmatprep.subr.mxu0 0.0
    %75 = vmatpush1.msra.mxu0 %v57
    %76 = vmatprep.subr.mxu0 0.0
    %77 = vmatpush1.msra.mxu0 0.0
    %78 = vmatprep.subr.mxu0 0.0
    %79 = vmatpush1.msra.mxu0 0.0
    %80 = vmatprep.subr.mxu0 0.0
    %81 = vmatpush1.msra.mxu0 0.0
    %82 = vmatprep.subr.mxu0 0.0
    %83 = vmatpush1.msra.mxu0 0.0
    %84 = vmatprep.subr.mxu0 0.0
    %85 = vmatpush1.msra.mxu0 0.0
    %86 = vmatprep.subr.mxu0 0.0
    %87 = vmatpush1.msra.mxu0 0.0
    %88 = vmatprep.subr.mxu0 0.0
    %89 = vmatpush1.msra.mxu0 0.0
    %90 = vmatprep.subr.mxu0 0.0
    %91 = vmatpush1.msra.mxu0 0.0
    %92 = vmatprep.subr.mxu0 0.0
    %93 = vmatpush1.msra.mxu0 0.0
    %94 = vmatprep.subr.mxu0 0.0
    %95 = vmatpush1.msra.mxu0 0.0
    %96 = vmatprep.subr.mxu0 0.0
    %97 = vmatpush1.msra.mxu0 0.0
    %98 = vmatprep.subr.mxu0 0.0
    %99 = vmatpush1.msra.mxu0 0.0
    %100 = vmatprep.subr.mxu0 0.0
    %101 = vmatpush1.msra.mxu0 0.0
    %102 = vmatprep.subr.mxu0 0.0
    %103 = vmatpush1.msra.mxu0 0.0
    %104 = vmatprep.subr.mxu0 0.0
    %105 = vmatpush1.msra.mxu0 0.0
    %106 = vmatprep.subr.mxu0 0.0
    %107 = vmatpush1.msra.mxu0 0.0
    %108 = vmatprep.subr.mxu0 0.0
    %109 = vmatpush1.msra.mxu0 0.0
    %110 = vmatprep.subr.mxu0 0.0
    %111 = vmatpush1.msra.mxu0 0.0
    %112 = vmatprep.subr.mxu0 0.0
    %113 = vmatpush1.msra.mxu0 0.0
    %114 = vmatprep.subr.mxu0 0.0
    %115 = vmatpush1.msra.mxu0 0.0
    %116 = vmatprep.subr.mxu0 0.0
    %117 = vmatpush1.msra.mxu0 0.0
    %118 = vmatprep.subr.mxu0 0.0
    %119 = vmatpush1.msra.mxu0 0.0
    %120 = vmatprep.subr.mxu0 0.0
    %121 = vmatpush1.msra.mxu0 0.0
    %122 = vmatprep.subr.mxu0 0.0
    %123 = vmatpush1.msra.mxu0 0.0
    %124 = vmatprep.subr.mxu0 0.0
    %125 = vmatpush1.msra.mxu0 0.0
    %126 = vmatprep.subr.mxu0 0.0
    %127 = vmatpush1.msra.mxu0 0.0
    %128 = vmatprep.subr.mxu0 0.0
    %129 = vmatpush1.msra.mxu0 0.0
    %130 = vmatprep.subr.mxu0 0.0
    %131 = vmatpush1.msra.mxu0 0.0
    %132 = vmatprep.subr.mxu0 0.0
    %133 = vmatpush1.msra.mxu0 0.0
    %134 = vmatprep.subr.mxu0 0.0
    %135 = vmatpush1.msra.mxu0 0.0
    %136 = vmatprep.mubr.f32.mxu0 0.0
    %137 = vmatmul.mubr.f32.gmra.mrb[0].mxu0 %v67
    %v138 = vpop.f32.mrb[0].mxu0
    %v139 = vadd.f32 %v63, %v138
    %v140 = vpop.f32.mrb[0].mxu0
    %141 = vmatprep.mubr.f32.mxu0 0.0
    %142 = vmatmul.mubr.f32.gmra.mrb[0].mxu0 %v70
    %v143 = vpop.f32.mrb[0].mxu0
    %v144 = vadd.f32 %v63, %v143
    %v145 = vpop.f32.mrb[0].mxu0
    %146 = vdwg.mxu0
    %v147 = vmax.f32 %v139, 0.0
    %v148 = vmax.f32 %v144, 0.0
    %v149 = vld [vmem:[%s3] sm:$0xff]
    %v150 = vld [vmem:[%s3 + $0x8] sm:$0xff]
    %v151 = vld [vmem:[%s3 + $0x10] sm:$0xff]
    %v152 = vld [vmem:[%s3 + $0x18] sm:$0xff]
    %v153 = vld [vmem:[%s3 + $0x20] sm:$0xff]
    %v154 = vld [vmem:[%s3 + $0x28] sm:$0xff]
    %v155 = vld [vmem:[%s3 + $0x30] sm:$0xff]
    %v156 = vld [vmem:[%s3 + $0x38] sm:$0xff]
    %v157 = vld [vmem:[%s3 + $0x40] sm:$0xff]
    %v158 = vld [vmem:[%s3 + $0x48] sm:$0xff]
    %v159 = vld [vmem:[%s3 + $0x50] sm:$0xff]
    %v160 = vld [vmem:[%s3 + $0x58] sm:$0xff]
    %v161 = vld [vmem:[%s3 + $0x60] sm:$0xff]
    %v162 = vld [vmem:[%s3 + $0x68] sm:$0xff]
    %v163 = vld [vmem:[%s3 + $0x70] sm:$0xff]
    %v164 = vld [vmem:[%s3 + $0x78] sm:$0xff]
    %v165 = vld [vmem:[%s4] sm:$0x1]
    %v167 = vlaneseq
    %v168 = vshrl.u32 %v167, 7
    %v169 = vsub.s32 0, %v168
    %v170 = vrot.slane %v165, %v169
    %172 = vmatprep.subr.mxu0 0.0
    %173 = vmatpush1.msra.mxu0 %v149
    %174 = vmatprep.subr.mxu0 0.0
    %175 = vmatpush1.msra.mxu0 %v150
    %176 = vmatprep.subr.mxu0 0.0
    %177 = vmatpush1.msra.mxu0 %v151
    %178 = vmatprep.subr.mxu0 0.0
    %179 = vmatpush1.msra.mxu0 %v152
    %180 = vmatprep.subr.mxu0 0.0
    %181 = vmatpush1.msra.mxu0 %v153
    %182 = vmatprep.subr.mxu0 0.0
    %183 = vmatpush1.msra.mxu0 %v154
    %184 = vmatprep.subr.mxu0 0.0
    %185 = vmatpush1.msra.mxu0 %v155
    %186 = vmatprep.subr.mxu0 0.0
    %187 = vmatpush1.msra.mxu0 %v156
    %188 = vmatprep.subr.mxu0 0.0
    %189 = vmatpush1.msra.mxu0 %v157
    %190 = vmatprep.subr.mxu0 0.0
    %191 = vmatpush1.msra.mxu0 %v158
    %192 = vmatprep.subr.mxu0 0.0
    %193 = vmatpush1.msra.mxu0 %v159
    %194 = vmatprep.subr.mxu0 0.0
    %195 = vmatpush1.msra.mxu0 %v160
    %196 = vmatprep.subr.mxu0 0.0
    %197 = vmatpush1.msra.mxu0 %v161
    %198 = vmatprep.subr.mxu0 0.0
    %199 = vmatpush1.msra.mxu0 %v162
    %200 = vmatprep.subr.mxu0 0.0
    %201 = vmatpush1.msra.mxu0 %v163
    %202 = vmatprep.subr.mxu0 0.0
    %203 = vmatpush1.msra.mxu0 %v164
    %204 = vmatprep.subr.mxu0 0.0
    %205 = vmatpush1.msra.mxu0 0.0
    %206 = vmatprep.subr.mxu0 0.0
    %207 = vmatpush1.msra.mxu0 0.0
    %208 = vmatprep.subr.mxu0 0.0
    %209 = vmatpush1.msra.mxu0 0.0
    %210 = vmatprep.subr.mxu0 0.0
    %211 = vmatpush1.msra.mxu0 0.0
    %212 = vmatprep.subr.mxu0 0.0
    %213 = vmatpush1.msra.mxu0 0.0
    %214 = vmatprep.subr.mxu0 0.0
    %215 = vmatpush1.msra.mxu0 0.0
    %216 = vmatprep.subr.mxu0 0.0
    %217 = vmatpush1.msra.mxu0 0.0
    %218 = vmatprep.subr.mxu0 0.0
    %219 = vmatpush1.msra.mxu0 0.0
    %220 = vmatprep.subr.mxu0 0.0
    %221 = vmatpush1.msra.mxu0 0.0
    %222 = vmatprep.subr.mxu0 0.0
    %223 = vmatpush1.msra.mxu0 0.0
    %224 = vmatprep.subr.mxu0 0.0
    %225 = vmatpush1.msra.mxu0 0.0
    %226 = vmatprep.subr.mxu0 0.0
    %227 = vmatpush1.msra.mxu0 0.0
    %228 = vmatprep.subr.mxu0 0.0
    %229 = vmatpush1.msra.mxu0 0.0
    %230 = vmatprep.subr.mxu0 0.0
    %231 = vmatpush1.msra.mxu0 0.0
    %232 = vmatprep.subr.mxu0 0.0
    %233 = vmatpush1.msra.mxu0 0.0
    %234 = vmatprep.subr.mxu0 0.0
    %235 = vmatpush1.msra.mxu0 0.0
    %236 = vmatprep.mubr.f32.mxu0 0.0
    %237 = vmatmul.mubr.f32.gmra.mrb[0].mxu0 %v147
    %v238 = vpop.f32.mrb[0].mxu0
    %v239 = vadd.f32 %v170, %v238
    %v240 = vpop.f32.mrb[0].mxu0
    %241 = vmatprep.mubr.f32.mxu0 0.0
    %242 = vmatmul.mubr.f32.gmra.mrb[0].mxu0 %v148
    %v243 = vpop.f32.mrb[0].mxu0
    %v244 = vadd.f32 %v170, %v243
    %v245 = vpop.f32.mrb[0].mxu0
    %246 = vdwg.mxu0
    %v247 = vmax.f32 %v239, 0.0
    %v248 = vmax.f32 %v244, 0.0
    %v249 = vld [vmem:[%s5] sm:$0xff]
    %v250 = vld [vmem:[%s5 + $0x8] sm:$0xff]
    %v251 = vld [vmem:[%s5 + $0x10] sm:$0xff]
    %v252 = vld [vmem:[%s5 + $0x18] sm:$0xff]
    %v253 = vld [vmem:[%s5 + $0x20] sm:$0xff]
    %v254 = vld [vmem:[%s5 + $0x28] sm:$0xff]
    %v255 = vld [vmem:[%s5 + $0x30] sm:$0xff]
    %v256 = vld [vmem:[%s5 + $0x38] sm:$0xff]
    %v257 = vld [vmem:[%s5 + $0x40] sm:$0xff]
    %v258 = vld [vmem:[%s5 + $0x48] sm:$0xff]
    %v259 = vld [vmem:[%s5 + $0x50] sm:$0xff]
    %v260 = vld [vmem:[%s5 + $0x58] sm:$0xff]
    %v261 = vld [vmem:[%s5 + $0x60] sm:$0xff]
    %v262 = vld [vmem:[%s5 + $0x68] sm:$0xff]
    %v263 = vld [vmem:[%s5 + $0x70] sm:$0xff]
    %v264 = vld [vmem:[%s5 + $0x78] sm:$0xff]
    %v265 = vld [vmem:[%s6] sm:$0x1]
    %v267 = vlaneseq
    %v268 = vshrl.u32 %v267, 7
    %v269 = vsub.s32 0, %v268
    %v270 = vrot.slane %v265, %v269
    %272 = vmatprep.subr.mxu0 0.0
    %273 = vmatpush1.msra.mxu0 %v249
    %274 = vmatprep.subr.mxu0 0.0
    %275 = vmatpush1.msra.mxu0 %v250
    %276 = vmatprep.subr.mxu0 0.0
    %277 = vmatpush1.msra.mxu0 %v251
    %278 = vmatprep.subr.mxu0 0.0
    %279 = vmatpush1.msra.mxu0 %v252
    %280 = vmatprep.subr.mxu0 0.0
    %281 = vmatpush1.msra.mxu0 %v253
    %282 = vmatprep.subr.mxu0 0.0
    %283 = vmatpush1.msra.mxu0 %v254
    %284 = vmatprep.subr.mxu0 0.0
    %285 = vmatpush1.msra.mxu0 %v255
    %286 = vmatprep.subr.mxu0 0.0
    %287 = vmatpush1.msra.mxu0 %v256
    %288 = vmatprep.subr.mxu0 0.0
    %289 = vmatpush1.msra.mxu0 %v257
    %290 = vmatprep.subr.mxu0 0.0
    %291 = vmatpush1.msra.mxu0 %v258
    %292 = vmatprep.subr.mxu0 0.0
    %293 = vmatpush1.msra.mxu0 %v259
    %294 = vmatprep.subr.mxu0 0.0
    %295 = vmatpush1.msra.mxu0 %v260
    %296 = vmatprep.subr.mxu0 0.0
    %297 = vmatpush1.msra.mxu0 %v261
    %298 = vmatprep.subr.mxu0 0.0
    %299 = vmatpush1.msra.mxu0 %v262
    %300 = vmatprep.subr.mxu0 0.0
    %301 = vmatpush1.msra.mxu0 %v263
    %302 = vmatprep.subr.mxu0 0.0
    %303 = vmatpush1.msra.mxu0 %v264
    %304 = vmatprep.subr.mxu0 0.0
    %305 = vmatpush1.msra.mxu0 0.0
    %306 = vmatprep.subr.mxu0 0.0
    %307 = vmatpush1.msra.mxu0 0.0
    %308 = vmatprep.subr.mxu0 0.0
    %309 = vmatpush1.msra.mxu0 0.0
    %310 = vmatprep.subr.mxu0 0.0
    %311 = vmatpush1.msra.mxu0 0.0
    %312 = vmatprep.subr.mxu0 0.0
    %313 = vmatpush1.msra.mxu0 0.0
    %314 = vmatprep.subr.mxu0 0.0
    %315 = vmatpush1.msra.mxu0 0.0
    %316 = vmatprep.subr.mxu0 0.0
    %317 = vmatpush1.msra.mxu0 0.0
    %318 = vmatprep.subr.mxu0 0.0
    %319 = vmatpush1.msra.mxu0 0.0
    %320 = vmatprep.subr.mxu0 0.0
    %321 = vmatpush1.msra.mxu0 0.0
    %322 = vmatprep.subr.mxu0 0.0
    %323 = vmatpush1.msra.mxu0 0.0
    %324 = vmatprep.subr.mxu0 0.0
    %325 = vmatpush1.msra.mxu0 0.0
    %326 = vmatprep.subr.mxu0 0.0
    %327 = vmatpush1.msra.mxu0 0.0
    %328 = vmatprep.subr.mxu0 0.0
    %329 = vmatpush1.msra.mxu0 0.0
    %330 = vmatprep.subr.mxu0 0.0
    %331 = vmatpush1.msra.mxu0 0.0
    %332 = vmatprep.subr.mxu0 0.0
    %333 = vmatpush1.msra.mxu0 0.0
    %334 = vmatprep.subr.mxu0 0.0
    %335 = vmatpush1.msra.mxu0 0.0
    %336 = vmatprep.mubr.f32.mxu0 0.0
    %337 = vmatmul.mubr.f32.gmra.mrb[0].mxu0 %v247
    %v338 = vpop.f32.mrb[0].mxu0
    %v339 = vadd.f32 %v270, %v338
    %v340 = vpop.f32.mrb[0].mxu0
    %341 = vmatprep.mubr.f32.mxu0 0.0
    %342 = vmatmul.mubr.f32.gmra.mrb[0].mxu0 %v248
    %v343 = vpop.f32.mrb[0].mxu0
    %v344 = vadd.f32 %v270, %v343
    %v345 = vpop.f32.mrb[0].mxu0
    %346 = vdwg.mxu0
    %vm347 = vcmask 31744
    %348 = vst.msk [vmem:[%s7] sm:$0xff] %vm347, %v339
    %349 = vst.msk [vmem:[%s7 + $0x8] sm:$0xff] %vm347, %v344
    // Predicated region
    $region38: #{tpu_custom_call.1} parent=1 // pred_check
      _
    $region39: #{tpu_custom_call.1} parent=1 // pred_check_branch
      %351 = sbr.rel (0) target = $region41
    $region40: #{tpu_custom_call.1} parent=1 // pred_region
      _
    $region41: #{tpu_custom_call.1} parent=1 // pred_fallthru
      _
    // Predicated region
    $region42: #{tpu_custom_call.1} parent=1 // pred_check
      _
    $region43: #{tpu_custom_call.1} parent=1 // pred_check_branch
      %353 = sbr.rel (0) target = $region45
    $region44: #{tpu_custom_call.1} parent=1 // pred_region
      _
    $region45: #{tpu_custom_call.1} parent=1 // pred_fallthru
      _
    %354 = vsyncpa [#allocation3], 1
    %355 = vsyncpa [#allocation5], 1

</llo_original>
